<compile_context>
chip_gen: v7x
topology: tpu7x:2x2x1
jax: 0.10.0
libtpu: 0.0.40
codegen_flags: <defaults>
</compile_context>

<pallas_src>
import functools

import jax
import jax.numpy as jnp
from jax import lax
from jax.experimental import pallas as pl
from jax.experimental.pallas import tpu as pltpu


def _round_up(a, b):
    return (a + b - 1) // b * b


def _pick_tf(F, target):
    """Largest divisor of F that is a multiple of 128 and <= target."""
    if F % 128 != 0:
        return F                      # tiny test shapes: take the whole F
    best = 128
    d = 128
    while d <= min(F, max(target, 128)):
        if F % d == 0:
            best = d
        d += 128
    return best


# --------------------------------------------------------------------------
# Kernel 1: router — gate matmul + sparsemixer (top-2) + combine weights
#           + per-(tile, expert) activity flags
# --------------------------------------------------------------------------
def _router_kernel(x_ref, gt_ref, logits_ref, cw_ref, flags_ref, *,
                   num_experts, jitter_eps, total_tokens, tm):
    x = x_ref[...]                                     # (tm, H) bf16
    gt = gt_ref[...]                                   # (H, E) bf16
    scores = jnp.dot(x, gt, preferred_element_type=jnp.float32)   # (tm, E)
    logits_ref[...] = scores

    neg_inf = jnp.float32(-jnp.inf)
    tiny = jnp.float32(1e-30)                          # avoid 0/0 on all-zero rows
    e_iota = lax.broadcasted_iota(jnp.int32, scores.shape, 1)      # (tm, E)

    def masked_softmax_pick(base, mask, idx):
        # softmax(masked_fill(base, mask, -inf)) gathered at idx
        g = jnp.where(mask, neg_inf, base)
        g = g - jnp.max(g, axis=-1, keepdims=True)
        p = jnp.exp(g)
        p = p / jnp.sum(p, axis=-1, keepdims=True)
        return jnp.sum(jnp.where(e_iota == idx, p, 0.0), axis=-1, keepdims=True)

    # ---- top-1 ----
    max1 = jnp.max(scores, axis=-1, keepdims=True)
    idx1 = jnp.min(jnp.where(scores == max1, e_iota, num_experts),
                   axis=-1, keepdims=True)             # first-occurrence argmax
    factor1 = jnp.maximum(jnp.maximum(jnp.abs(scores), max1), tiny)
    mask1 = (max1 - scores) / factor1 > 2.0 * jitter_eps
    mult1 = masked_softmax_pick(scores, mask1, idx1)

    # ---- top-2 (scatter -inf at the top-1 index) ----
    masked_scores = jnp.where(e_iota == idx1, neg_inf, scores)
    max2 = jnp.max(masked_scores, axis=-1, keepdims=True)
    idx2 = jnp.min(jnp.where(masked_scores == max2, e_iota, num_experts),
                   axis=-1, keepdims=True)
    factor2 = jnp.maximum(jnp.maximum(jnp.abs(scores), max2), tiny)
    mask2 = (max2 - scores) / factor2 > 2.0 * jitter_eps
    mult2 = masked_softmax_pick(masked_scores, mask2, idx2)

    # combine weights (renormalize=False): cw[t, e] = sum_k mult_k[t] * (idx_k == e)
    combine = (jnp.where(e_iota == idx1, mult1, 0.0)
               + jnp.where(e_iota == idx2, mult2, 0.0))             # (tm, E)

    # zero padded tail rows so expert-activity flags stay exact
    row = lax.broadcasted_iota(jnp.int32, scores.shape, 0)
    valid = (pl.program_id(0) * tm + row) < total_tokens
    cw = jnp.where(valid, combine, 0.0)
    cw_ref[...] = cw

    # per-(tile, expert) activity flag (1 if any token of this tile uses e)
    act_f = jnp.max(jnp.where(cw > 0.0, 1.0, 0.0), axis=0, keepdims=True)  # (1, E)
    flags_ref[0] = act_f.astype(jnp.int32)


# --------------------------------------------------------------------------
# Kernel 2: fused MoE expert FFN — grid = (token tiles, F tiles, active slots)
# --------------------------------------------------------------------------
def _moe_kernel(eid_ref, nact_ref, x_ref, w1_ref, w3_ref, w2_ref, cw_ref,
                o_ref, acc_ref):
    i = pl.program_id(0)        # token tile
    f = pl.program_id(1)        # F tile
    a = pl.program_id(2)        # active-expert slot
    n_f = pl.num_programs(1)
    n_slots = pl.num_programs(2)

    @pl.when(jnp.logical_and(f == 0, a == 0))
    def _init():
        acc_ref[...] = jnp.zeros_like(acc_ref)

    # Only the first n_active[i] slots carry real experts; padded slots repeat
    # the last active expert id so their weight blocks are never re-DMA'd.
    @pl.when(a < nact_ref[i])
    def _compute():
        x = x_ref[...]               # (tm, H)  bf16
        w1 = w1_ref[0]               # (H, tf)  bf16  (pre-transposed [E, H, F])
        w3 = w3_ref[0]               # (H, tf)  bf16
        w2 = w2_ref[0]               # (tf, H)  bf16  (pre-transposed [E, F, H])
        g = jnp.dot(x, w1, preferred_element_type=jnp.float32)     # (tm, tf)
        u = jnp.dot(x, w3, preferred_element_type=jnp.float32)     # (tm, tf)
        act = (g * lax.logistic(g)) * u                            # silu(g) * u

        # fold the combine weight into the (tm, tf) activations (cheaper than
        # scaling the (tm, H) down-projection output)
        e = eid_ref[i * n_slots + a]
        cw = cw_ref[...]             # (tm, E) f32
        col = lax.broadcasted_iota(jnp.int32, cw.shape, 1)
        w_col = jnp.sum(jnp.where(col == e, cw, 0.0), axis=-1, keepdims=True)
        act = act * w_col            # (tm, tf)

        acc_ref[...] += jnp.dot(act.astype(w2.dtype), w2,
                                preferred_element_type=jnp.float32)  # (tm, H)

    @pl.when(jnp.logical_and(f == n_f - 1, a == n_slots - 1))
    def _store():
        o_ref[...] = acc_ref[...].astype(o_ref.dtype)


# --------------------------------------------------------------------------
# Wrapper
# --------------------------------------------------------------------------
def phimoe_sparse_moe_block(hidden_states, gate_w, w1, w3, w2, *,
                            router_jitter_noise, tm=256, tf=640,
                            compute_dtype=jnp.bfloat16):
    """hidden_states: [B, S, H]. gate_w: [E, H]; w1/w3: [E, F, H]; w2: [E, H, F].

    Tiling guidance: tm=256/tf=640 fits v7x's 64 MiB VMEM and is near the
    roofline ridge on v5e/v7x; on v6e long prefills, tm=512 halves weight
    re-streaming (128 MiB VMEM).
    """
    B, S, H = hidden_states.shape
    T = B * S
    E, F = w1.shape[0], w1.shape[1]

    # TODO(synk): input_jitter_noise > 0 (training-time stochastic multiplicative
    # input noise) and sparsemixer's training-time sampling paths are not
    # implemented; the eval path is exact.

    # token tiling (tail-padded, multiple of 16 for bf16 sublane packing)
    tm_eff = min(tm, _round_up(T, 16))
    tm_eff = _round_up(tm_eff, 16)
    T_pad = _round_up(T, tm_eff)
    num_tiles = T_pad // tm_eff

    # F tiling: divisor of F that is a multiple of 128 (e.g. 640 for F=6400)
    tf_eff = _pick_tf(F, tf)
    n_f = F // tf_eff

    # static upper bound on distinct active experts per token tile (top-2)
    n_slots = max(1, min(E, 2 * min(tm_eff, T)))

    x = hidden_states.reshape(T, H)
    if T_pad != T:
        x = jnp.pad(x, ((0, T_pad - T), (0, 0)))
    x_c = x.astype(compute_dtype)

    # One-time layout change + cast (in a real model the weights are stored in
    # these layouts/dtype, so none of this is on the per-call hot path).
    gate_t = gate_w.astype(compute_dtype).T                 # [H, E]
    w1_t = jnp.transpose(w1.astype(compute_dtype), (0, 2, 1))   # [E, H, F]
    w3_t = jnp.transpose(w3.astype(compute_dtype), (0, 2, 1))   # [E, H, F]
    w2_t = jnp.transpose(w2.astype(compute_dtype), (0, 2, 1))   # [E, F, H]

    # ---- router: gate matmul + sparsemixer + combine weights + flags ----
    router_logits, combine_w, flags3 = pl.pallas_call(
        functools.partial(_router_kernel, num_experts=E,
                          jitter_eps=float(router_jitter_noise),
                          total_tokens=T, tm=tm_eff),
        out_shape=(jax.ShapeDtypeStruct((T_pad, E), jnp.float32),
                   jax.ShapeDtypeStruct((T_pad, E), jnp.float32),
                   jax.ShapeDtypeStruct((num_tiles, 1, E), jnp.int32)),
        grid_spec=pltpu.PrefetchScalarGridSpec(
            num_scalar_prefetch=0,
            grid=(num_tiles,),
            in_specs=[pl.BlockSpec((tm_eff, H), lambda i: (i, 0)),
                      pl.BlockSpec((H, E), lambda i: (0, 0))],
            out_specs=[pl.BlockSpec((tm_eff, E), lambda i: (i, 0)),
                       pl.BlockSpec((tm_eff, E), lambda i: (i, 0)),
                       pl.BlockSpec((1, 1, E), lambda i: (i, 0, 0))]),
        compiler_params=pltpu.CompilerParams(
            dimension_semantics=("parallel",)),
    )(x_c, gate_t)

    # ---- compact per-tile active experts (tiny (num_tiles, E) XLA work) ----
    flags = flags3.reshape(num_tiles, E)
    n_act = jnp.maximum(jnp.sum(flags, axis=-1), 1).astype(jnp.int32)  # (num_tiles,)
    ids = lax.broadcasted_iota(jnp.int32, (num_tiles, E), 1)
    key = jnp.where(flags > 0, ids, ids + E)
    order = jnp.argsort(key, axis=-1).astype(jnp.int32)       # active ids first
    slot = jnp.minimum(jnp.arange(n_slots, dtype=jnp.int32)[None, :],
                       (n_act - 1)[:, None])
    eid_tbl = jnp.take_along_axis(order, slot, axis=-1)        # (num_tiles, n_slots)
    eid_flat = eid_tbl.reshape(-1).astype(jnp.int32)           # flat SMEM table

    # ---- VMEM budget from the actual double-buffered block sizes ----
    bpe = jnp.dtype(compute_dtype).itemsize
    x_blk = tm_eff * H * bpe
    w_blk = tf_eff * H * bpe
    cw_blk = tm_eff * E * 4
    out_blk = tm_eff * H * bpe
    acc_blk = tm_eff * H * 4
    vmem_need = 2 * (x_blk + 3 * w_blk + cw_blk + out_blk) + acc_blk
    vmem_limit = int(min(max(vmem_need + (8 << 20), 32 << 20), 120 << 20))

    # ---- fused MoE experts ----
    # grid order (tile, F tile, slot): padded slots repeat the previous block
    # index -> Pallas elides their weight DMAs; compute is gated on n_act[i].
    out = pl.pallas_call(
        _moe_kernel,
        out_shape=jax.ShapeDtypeStruct((T_pad, H), compute_dtype),
        grid_spec=pltpu.PrefetchScalarGridSpec(
            num_scalar_prefetch=2,
            grid=(num_tiles, n_f, n_slots),
            in_specs=[
                pl.BlockSpec((tm_eff, H),
                             lambda i, f, a, eid, na: (i, 0)),
                pl.BlockSpec((1, H, tf_eff),
                             lambda i, f, a, eid, na: (eid[i * n_slots + a], 0, f)),
                pl.BlockSpec((1, H, tf_eff),
                             lambda i, f, a, eid, na: (eid[i * n_slots + a], 0, f)),
                pl.BlockSpec((1, tf_eff, H),
                             lambda i, f, a, eid, na: (eid[i * n_slots + a], f, 0)),
                pl.BlockSpec((tm_eff, E),
                             lambda i, f, a, eid, na: (i, 0)),
            ],
            out_specs=pl.BlockSpec((tm_eff, H),
                                   lambda i, f, a, eid, na: (i, 0)),
            scratch_shapes=[pltpu.VMEM((tm_eff, H), jnp.float32)]),
        compiler_params=pltpu.CompilerParams(
            dimension_semantics=("parallel", "arbitrary", "arbitrary"),
            vmem_limit_bytes=vmem_limit),
    )(eid_flat, n_act, x_c, w1_t, w3_t, w2_t, combine_w)
    # TODO(synk): v7x decode (single token tile) could split the F axis across
    # the two TensorCores (core_map) for ~2x; not done here.

    out = out[:T].reshape(B, S, H).astype(hidden_states.dtype)
    return out, router_logits[:T]


# --------------------------------------------------------------------------
# Pure-JAX reference (validation only)
# --------------------------------------------------------------------------
def _sparsemixer_ref(scores, jitter_eps):
    neg_inf = jnp.float32(-jnp.inf)
    E = scores.shape[-1]
    e_iota = jnp.arange(E)[None, :]

    max1 = jnp.max(scores, axis=-1, keepdims=True)
    idx1 = jnp.argmax(scores, axis=-1, keepdims=True)
    factor1 = jnp.maximum(jnp.abs(scores), max1)
    mask1 = (max1 - scores) / factor1 > 2 * jitter_eps
    g1 = jax.nn.softmax(jnp.where(mask1, neg_inf, scores), axis=-1)
    m1 = jnp.take_along_axis(g1, idx1, axis=-1)

    masked_scores = jnp.where(e_iota == idx1, neg_inf, scores)
    max2 = jnp.max(masked_scores, axis=-1, keepdims=True)
    idx2 = jnp.argmax(masked_scores, axis=-1, keepdims=True)
    factor2 = jnp.maximum(jnp.abs(scores), max2)
    mask2 = (max2 - scores) / factor2 > 2 * jitter_eps
    g2 = jax.nn.softmax(jnp.where(mask2, neg_inf, masked_scores), axis=-1)
    m2 = jnp.take_along_axis(g2, idx2, axis=-1)

    return (jnp.concatenate([m1, m2], axis=-1),
            jnp.concatenate([idx1, idx2], axis=-1))


def _ref_from_logits(x, router_logits, w1, w3, w2, jitter_eps, act_dtype):
    E = w1.shape[0]
    tw, ti = _sparsemixer_ref(router_logits, jitter_eps)
    cw = jnp.sum(jax.nn.one_hot(ti, E, dtype=jnp.float32) * tw[..., None], axis=1)
    out = jnp.zeros_like(x)
    for e in range(E):
        g = jnp.dot(x, w1[e].T, preferred_element_type=jnp.float32)
        u = jnp.dot(x, w3[e].T, preferred_element_type=jnp.float32)
        act = (jax.nn.silu(g) * u) * cw[:, e:e + 1]
        act = act.astype(act_dtype).astype(jnp.float32)
        out = out + jnp.dot(act, w2[e].T, preferred_element_type=jnp.float32)
    return out


if __name__ == "__main__":
    # Small config consistent with PhiMoESparseMoeBlock
    B, S, H = 2, 8, 32          # batch, seq, hidden_size
    E, F = 8, 64                # num_local_experts, intermediate_size
    router_jitter_noise = 0.01
    # input_jitter_noise = 0.0 -> no stochastic input scaling

    key = jax.random.PRNGKey(0)
    k_x, k_g, k_w1, k_w3, k_w2 = jax.random.split(key, 5)

    hidden_states = jax.random.normal(k_x, (B, S, H), dtype=jnp.float32)
    gate_w = jax.random.normal(k_g, (E, H), dtype=jnp.float32) * (H ** -0.5)
    w1 = jax.random.normal(k_w1, (E, F, H), dtype=jnp.float32) * (H ** -0.5)
    w3 = jax.random.normal(k_w3, (E, F, H), dtype=jnp.float32) * (H ** -0.5)
    w2 = jax.random.normal(k_w2, (E, H, F), dtype=jnp.float32) * (F ** -0.5)

    out, router_logits = phimoe_sparse_moe_block(
        hidden_states, gate_w, w1, w3, w2,
        router_jitter_noise=router_jitter_noise)
    out = jax.block_until_ready(out)
    router_logits = jax.block_until_ready(router_logits)

    # Validation: reference uses the same bf16-rounded inputs the kernel
    # consumes (f32 math on bf16-rounded values), is fed the kernel's logits so
    # MXU-vs-XLA rounding cannot flip an argmax, and mirrors the kernel's
    # rounding points (bf16 activations before the down-proj, bf16 output).
    bf = jnp.bfloat16
    x_q = hidden_states.reshape(-1, H).astype(bf).astype(jnp.float32)
    gate_q = gate_w.astype(bf).astype(jnp.float32)
    w1_q = w1.astype(bf).astype(jnp.float32)
    w3_q = w3.astype(bf).astype(jnp.float32)
    w2_q = w2.astype(bf).astype(jnp.float32)

    ref_logits = jnp.dot(x_q, gate_q.T, preferred_element_type=jnp.float32)
    ref_out = _ref_from_logits(x_q, router_logits, w1_q, w3_q, w2_q,
                               router_jitter_noise, bf)
    ref_out = ref_out.astype(bf).astype(jnp.float32).reshape(B, S, H)

    assert bool(jnp.all(jnp.isfinite(out))), "non-finite values in moe output"
    assert jnp.allclose(router_logits, ref_logits, rtol=2e-2, atol=2e-2), \
        "router logits mismatch"
    assert jnp.allclose(out, ref_out, rtol=2e-2, atol=2e-2), \
        "moe output mismatch"

    print("KERNEL_OK")
</pallas_src>

<mosaic_0001>
module attributes {stable_mosaic.version = 11 : i64} {
  func.func @_router_kernel(%arg0: i32, %arg1: memref<16x32xbf16, #tpu.memory_space<vmem>>, %arg2: memref<32x8xbf16, #tpu.memory_space<vmem>>, %arg3: memref<16x8xf32, #tpu.memory_space<vmem>>, %arg4: memref<16x8xf32, #tpu.memory_space<vmem>>, %arg5: memref<1x1x8xi32, #tpu.memory_space<vmem>>) attributes {dimension_semantics = [#tpu.dimension_semantics<parallel>], iteration_bounds = array<i64: 1>, scalar_prefetch = 0 : i64, scratch_operands = 0 : i64, tpu.core_type = #tpu.core_type<tc>, window_params = [{transform_indices = @transform_0, window_bounds = array<i64: 16, 32>}, {pipeline_mode = #tpu.pipeline_mode<synchronous>, transform_indices = @transform_1, window_bounds = array<i64: 32, 8>}, {transform_indices = @transform_2, window_bounds = array<i64: 16, 8>}, {transform_indices = @transform_3, window_bounds = array<i64: 16, 8>}, {transform_indices = @transform_4, window_bounds = array<i64: 1, 1, 8>}]} {
    %c0 = arith.constant 0 : index
    %c0_0 = arith.constant 0 : index
    %0 = vector.load %arg1[%c0, %c0_0] : memref<16x32xbf16, #tpu.memory_space<vmem>>, vector<16x32xbf16>
    %c0_1 = arith.constant 0 : index
    %c0_2 = arith.constant 0 : index
    %1 = vector.load %arg2[%c0_1, %c0_2] : memref<32x8xbf16, #tpu.memory_space<vmem>>, vector<32x8xbf16>
    %cst = arith.constant dense<0.000000e+00> : vector<16x8xf32>
    %2 = tpu.matmul %0, %1, %cst {dimension_numbers = #tpu.dot_dimension_numbers<[1], [0], [0], [1], [0, 0, 1, 1], [], []>} : vector<16x32xbf16>, vector<32x8xbf16>, vector<16x8xf32> -> vector<16x8xf32>
    %c0_3 = arith.constant 0 : index
    %c0_4 = arith.constant 0 : index
    %3 = vector.load %arg3[%c0_3, %c0_4] : memref<16x8xf32, #tpu.memory_space<vmem>>, vector<16x8xf32>
    tpu.vector_store %arg3[%c0_3, %c0_4], %2 {strides = array<i32>} : memref<16x8xf32, #tpu.memory_space<vmem>>, vector<16x8xf32>,
    %4 = tpu.iota {dimensions = array<i32: 1>} : vector<16x8xi32>
    %cst_5 = arith.constant dense<0xFF800000> : vector<16xf32>
    %5 = vector.multi_reduction <maximumf>, %2, %cst_5 [1] : vector<16x8xf32> to vector<16xf32>
    %6 = vector.shape_cast %5 : vector<16xf32> to vector<16x1xf32>
    %7 = vector.broadcast %6 : vector<16x1xf32> to vector<16x8xf32>
    %8 = arith.cmpf oeq, %2, %7 : vector<16x8xf32>
    %c8_i32 = arith.constant 8 : i32
    %9 = vector.broadcast %c8_i32 : i32 to vector<16x8xi32>
    %10 = arith.select %8, %4, %9 : vector<16x8xi1>, vector<16x8xi32>
    %cst_6 = arith.constant dense<2147483647> : vector<16xi32>
    %11 = vector.multi_reduction <minsi>, %10, %cst_6 [1] : vector<16x8xi32> to vector<16xi32>
    %12 = vector.shape_cast %11 : vector<16xi32> to vector<16x1xi32>
    %13 = math.absf %2 : vector<16x8xf32>
    %14 = vector.broadcast %6 : vector<16x1xf32> to vector<16x8xf32>
    %15 = arith.maximumf %13, %14 : vector<16x8xf32>
    %cst_7 = arith.constant 1.000000e-30 : f32
    %16 = vector.broadcast %cst_7 : f32 to vector<16x8xf32>
    %17 = arith.maximumf %15, %16 : vector<16x8xf32>
    %18 = vector.broadcast %6 : vector<16x1xf32> to vector<16x8xf32>
    %19 = arith.subf %18, %2 : vector<16x8xf32>
    %20 = arith.divf %19, %17 : vector<16x8xf32>
    %cst_8 = arith.constant 2.000000e-02 : f32
    %21 = vector.broadcast %cst_8 : f32 to vector<16x8xf32>
    %22 = arith.cmpf ogt, %20, %21 : vector<16x8xf32>
    %cst_9 = arith.constant 0xFF800000 : f32
    %23 = vector.broadcast %cst_9 : f32 to vector<16x8xf32>
    %24 = arith.select %22, %23, %2 : vector<16x8xi1>, vector<16x8xf32>
    %cst_10 = arith.constant dense<0xFF800000> : vector<16xf32>
    %25 = vector.multi_reduction <maximumf>, %24, %cst_10 [1] : vector<16x8xf32> to vector<16xf32>
    %26 = vector.shape_cast %25 : vector<16xf32> to vector<16x1xf32>
    %27 = vector.broadcast %26 : vector<16x1xf32> to vector<16x8xf32>
    %28 = arith.subf %24, %27 : vector<16x8xf32>
    %29 = math.exp %28 : vector<16x8xf32>
    %cst_11 = arith.constant dense<0.000000e+00> : vector<16xf32>
    %30 = vector.multi_reduction <add>, %29, %cst_11 [1] : vector<16x8xf32> to vector<16xf32>
    %31 = vector.shape_cast %30 : vector<16xf32> to vector<16x1xf32>
    %32 = vector.broadcast %31 : vector<16x1xf32> to vector<16x8xf32>
    %33 = arith.divf %29, %32 : vector<16x8xf32>
    %34 = vector.broadcast %12 : vector<16x1xi32> to vector<16x8xi32>
    %35 = arith.cmpi eq, %4, %34 : vector<16x8xi32>
    %cst_12 = arith.constant 0.000000e+00 : f32
    %36 = vector.broadcast %cst_12 : f32 to vector<16x8xf32>
    %37 = arith.select %35, %33, %36 : vector<16x8xi1>, vector<16x8xf32>
    %cst_13 = arith.constant dense<0.000000e+00> : vector<16xf32>
    %38 = vector.multi_reduction <add>, %37, %cst_13 [1] : vector<16x8xf32> to vector<16xf32>
    %39 = vector.shape_cast %38 : vector<16xf32> to vector<16x1xf32>
    %40 = vector.broadcast %12 : vector<16x1xi32> to vector<16x8xi32>
    %41 = arith.cmpi eq, %4, %40 : vector<16x8xi32>
    %cst_14 = arith.constant 0xFF800000 : f32
    %42 = vector.broadcast %cst_14 : f32 to vector<16x8xf32>
    %43 = arith.select %41, %42, %2 : vector<16x8xi1>, vector<16x8xf32>
    %cst_15 = arith.constant dense<0xFF800000> : vector<16xf32>
    %44 = vector.multi_reduction <maximumf>, %43, %cst_15 [1] : vector<16x8xf32> to vector<16xf32>
    %45 = vector.shape_cast %44 : vector<16xf32> to vector<16x1xf32>
    %46 = vector.broadcast %45 : vector<16x1xf32> to vector<16x8xf32>
    %47 = arith.cmpf oeq, %43, %46 : vector<16x8xf32>
    %c8_i32_16 = arith.constant 8 : i32
    %48 = vector.broadcast %c8_i32_16 : i32 to vector<16x8xi32>
    %49 = arith.select %47, %4, %48 : vector<16x8xi1>, vector<16x8xi32>
    %cst_17 = arith.constant dense<2147483647> : vector<16xi32>
    %50 = vector.multi_reduction <minsi>, %49, %cst_17 [1] : vector<16x8xi32> to vector<16xi32>
    %51 = vector.shape_cast %50 : vector<16xi32> to vector<16x1xi32>
    %52 = math.absf %2 : vector<16x8xf32>
    %53 = vector.broadcast %45 : vector<16x1xf32> to vector<16x8xf32>
    %54 = arith.maximumf %52, %53 : vector<16x8xf32>
    %cst_18 = arith.constant 1.000000e-30 : f32
    %55 = vector.broadcast %cst_18 : f32 to vector<16x8xf32>
    %56 = arith.maximumf %54, %55 : vector<16x8xf32>
    %57 = vector.broadcast %45 : vector<16x1xf32> to vector<16x8xf32>
    %58 = arith.subf %57, %2 : vector<16x8xf32>
    %59 = arith.divf %58, %56 : vector<16x8xf32>
    %cst_19 = arith.constant 2.000000e-02 : f32
    %60 = vector.broadcast %cst_19 : f32 to vector<16x8xf32>
    %61 = arith.cmpf ogt, %59, %60 : vector<16x8xf32>
    %cst_20 = arith.constant 0xFF800000 : f32
    %62 = vector.broadcast %cst_20 : f32 to vector<16x8xf32>
    %63 = arith.select %61, %62, %43 : vector<16x8xi1>, vector<16x8xf32>
    %cst_21 = arith.constant dense<0xFF800000> : vector<16xf32>
    %64 = vector.multi_reduction <maximumf>, %63, %cst_21 [1] : vector<16x8xf32> to vector<16xf32>
    %65 = vector.shape_cast %64 : vector<16xf32> to vector<16x1xf32>
    %66 = vector.broadcast %65 : vector<16x1xf32> to vector<16x8xf32>
    %67 = arith.subf %63, %66 : vector<16x8xf32>
    %68 = math.exp %67 : vector<16x8xf32>
    %cst_22 = arith.constant dense<0.000000e+00> : vector<16xf32>
    %69 = vector.multi_reduction <add>, %68, %cst_22 [1] : vector<16x8xf32> to vector<16xf32>
    %70 = vector.shape_cast %69 : vector<16xf32> to vector<16x1xf32>
    %71 = vector.broadcast %70 : vector<16x1xf32> to vector<16x8xf32>
    %72 = arith.divf %68, %71 : vector<16x8xf32>
    %73 = vector.broadcast %51 : vector<16x1xi32> to vector<16x8xi32>
    %74 = arith.cmpi eq, %4, %73 : vector<16x8xi32>
    %cst_23 = arith.constant 0.000000e+00 : f32
    %75 = vector.broadcast %cst_23 : f32 to vector<16x8xf32>
    %76 = arith.select %74, %72, %75 : vector<16x8xi1>, vector<16x8xf32>
    %cst_24 = arith.constant dense<0.000000e+00> : vector<16xf32>
    %77 = vector.multi_reduction <add>, %76, %cst_24 [1] : vector<16x8xf32> to vector<16xf32>
    %78 = vector.shape_cast %77 : vector<16xf32> to vector<16x1xf32>
    %79 = vector.broadcast %12 : vector<16x1xi32> to vector<16x8xi32>
    %80 = arith.cmpi eq, %4, %79 : vector<16x8xi32>
    %cst_25 = arith.constant 0.000000e+00 : f32
    %81 = vector.shape_cast %39 : vector<16x1xf32> to vector<16x1xf32>
    %82 = vector.broadcast %81 : vector<16x1xf32> to vector<16x8xf32>
    %83 = vector.broadcast %cst_25 : f32 to vector<16x8xf32>
    %84 = arith.select %80, %82, %83 : vector<16x8xi1>, vector<16x8xf32>
    %85 = vector.broadcast %51 : vector<16x1xi32> to vector<16x8xi32>
    %86 = arith.cmpi eq, %4, %85 : vector<16x8xi32>
    %cst_26 = arith.constant 0.000000e+00 : f32
    %87 = vector.shape_cast %78 : vector<16x1xf32> to vector<16x1xf32>
    %88 = vector.broadcast %87 : vector<16x1xf32> to vector<16x8xf32>
    %89 = vector.broadcast %cst_26 : f32 to vector<16x8xf32>
    %90 = arith.select %86, %88, %89 : vector<16x8xi1>, vector<16x8xf32>
    %91 = arith.addf %84, %90 : vector<16x8xf32>
    %92 = tpu.iota {dimensions = array<i32: 0>} : vector<16x8xi32>
    %c16_i32 = arith.constant 16 : i32
    %93 = arith.muli %arg0, %c16_i32 : i32
    %94 = vector.broadcast %93 : i32 to vector<16x8xi32>
    %95 = arith.addi %94, %92 : vector<16x8xi32>
    %c16_i32_27 = arith.constant 16 : i32
    %96 = vector.broadcast %c16_i32_27 : i32 to vector<16x8xi32>
    %97 = arith.cmpi slt, %95, %96 : vector<16x8xi32>
    %cst_28 = arith.constant 0.000000e+00 : f32
    %98 = vector.broadcast %cst_28 : f32 to vector<16x8xf32>
    %99 = arith.select %97, %91, %98 : vector<16x8xi1>, vector<16x8xf32>
    %c0_29 = arith.constant 0 : index
    %c0_30 = arith.constant 0 : index
    %100 = vector.load %arg4[%c0_29, %c0_30] : memref<16x8xf32, #tpu.memory_space<vmem>>, vector<16x8xf32>
    tpu.vector_store %arg4[%c0_29, %c0_30], %99 {strides = array<i32>} : memref<16x8xf32, #tpu.memory_space<vmem>>, vector<16x8xf32>,
    %cst_31 = arith.constant 0.000000e+00 : f32
    %101 = vector.broadcast %cst_31 : f32 to vector<16x8xf32>
    %102 = arith.cmpf ogt, %99, %101 : vector<16x8xf32>
    %cst_32 = arith.constant 1.000000e+00 : f32
    %cst_33 = arith.constant 0.000000e+00 : f32
    %103 = vector.broadcast %cst_32 : f32 to vector<16x8xf32>
    %104 = vector.broadcast %cst_33 : f32 to vector<16x8xf32>
    %105 = arith.select %102, %103, %104 : vector<16x8xi1>, vector<16x8xf32>
    %cst_34 = arith.constant dense<0xFF800000> : vector<8xf32>
    %106 = vector.multi_reduction <maximumf>, %105, %cst_34 [0] : vector<16x8xf32> to vector<8xf32>
    %107 = vector.shape_cast %106 : vector<8xf32> to vector<1x8xf32>
    %108 = arith.fptosi %107 : vector<1x8xf32> to vector<1x8xi32>
    %c0_35 = arith.constant 0 : index
    %c0_36 = arith.constant 0 : index
    %c0_37 = arith.constant 0 : index
    %109 = vector.load %arg5[%c0_35, %c0_36, %c0_37] : memref<1x1x8xi32, #tpu.memory_space<vmem>>, vector<1x1x8xi32>
    %110 = vector.shape_cast %109 : vector<1x1x8xi32> to vector<1x8xi32>
    %111 = vector.shape_cast %108 : vector<1x8xi32> to vector<1x1x8xi32>
    tpu.vector_store %arg5[%c0_35, %c0_36, %c0_37], %111 {strides = array<i32>} : memref<1x1x8xi32, #tpu.memory_space<vmem>>, vector<1x1x8xi32>,
    return
  }
  func.func @transform_0(%arg0: i32) -> (i32, i32) {
    %c0_i32 = arith.constant 0 : i32
    %c0_i32_0 = arith.constant 0 : i32
    return %arg0, %c0_i32 : i32, i32
  }
  func.func @transform_1(%arg0: i32) -> (i32, i32) {
    %c0_i32 = arith.constant 0 : i32
    %c0_i32_0 = arith.constant 0 : i32
    %c0_i32_1 = arith.constant 0 : i32
    return %c0_i32, %c0_i32_0 : i32, i32
  }
  func.func @transform_2(%arg0: i32) -> (i32, i32) {
    %c0_i32 = arith.constant 0 : i32
    %c0_i32_0 = arith.constant 0 : i32
    return %arg0, %c0_i32 : i32, i32
  }
  func.func @transform_3(%arg0: i32) -> (i32, i32) {
    %c0_i32 = arith.constant 0 : i32
    %c0_i32_0 = arith.constant 0 : i32
    return %arg0, %c0_i32 : i32, i32
  }
  func.func @transform_4(%arg0: i32) -> (i32, i32, i32) {
    %c0_i32 = arith.constant 0 : i32
    %c0_i32_0 = arith.constant 0 : i32
    %c0_i32_1 = arith.constant 0 : i32
    return %arg0, %c0_i32, %c0_i32_0 : i32, i32, i32
  }
}

</mosaic_0001>

<llo_original>
// kernel: tpu_custom_call.1
$region0: #{tpu_custom_call.1}
  #allocation0 [shape = 'u32[]', space=smem, size = 0x4, offset = 0x4, fixed_abs, tag = 'smem constant byte address 0x4 - core index']
  #allocation1 [shape = 'u32[144,128]{1,0:T(1,128)}', space=vmem, size = 0x12000, scoped, tag = 'internal scratch']
  %s0 = inlined_call_operand.vmem [shape: bf16[16,32], index: 0, kind: input, shape index: {}]
  %s1 = inlined_call_operand.vmem [shape: bf16[32,8], index: 1, kind: input, shape index: {}]
  %s2 = inlined_call_operand.vmem [shape: f32[16,8], index: 2, kind: output, shape index: {0}]
  %s3 = inlined_call_operand.vmem [shape: f32[16,8], index: 3, kind: output, shape index: {1}]
  %s4 = inlined_call_operand.hbm [shape: s32[1,1,8], index: 4, kind: output, shape index: {2}]
  %5 = xla_tuple %s2, %s3, %s4
  %s6 = sld [smem:[#allocation0]]
  $region34: #{tpu_custom_call.1} parent=0
    _
  %s8 = ssub.s32 1, %s6
  %s9 = scalar_select 0, %s8, %s6
  $region1: #{tpu_custom_call.1} parent=0
    #allocation2 [shape = 'u8[512]{0}', space=vmem, size = 0x400, scoped, tag = 'output window, operand 2, single buffered']
    #allocation3 [shape = 's32[1]{0}', space=sflag, size = 0x4, scoped, tag = 'scoped memory for tpu_custom_call.1']
    %10 = vsyncpa [#allocation3], 0
    // Predicated region
    $region2: #{tpu_custom_call.1} parent=1 // pred_check
      _
    $region3: #{tpu_custom_call.1} parent=1 // pred_check_branch
      %12 = sbr.rel (0) target = $region5
    $region4: #{tpu_custom_call.1} parent=1 // pred_region
      _
    $region5: #{tpu_custom_call.1} parent=1 // pred_fallthru
      _
    // Predicated region
    $region6: #{tpu_custom_call.1} parent=1 // pred_check
      _
    $region7: #{tpu_custom_call.1} parent=1 // pred_check_branch
      %14 = sbr.rel (0) target = $region9
    $region8: #{tpu_custom_call.1} parent=1 // pred_region
      _
    $region9: #{tpu_custom_call.1} parent=1 // pred_fallthru
      _
    %v16 = vld [vmem:[%s0] sm:$0xf]
    %v17 = vld [vmem:[%s0 + $0x4] sm:$0xf]
    %v18 = vld [vmem:[%s1] sm:$0xf]
    %v19 = vld [vmem:[%s1 + $0x4] sm:$0xf]
    %v20 = vld [vmem:[%s1 + $0x8] sm:$0xf]
    %v21 = vld [vmem:[%s1 + $0xc] sm:$0xf]
    %v24 = vunpack.c.l.b16 %v16
    %v25 = vunpack.c.l.b16 %v17
    %v26 = vpack.c.b16 %v25, %v24
    %v31 = vunpack.c.l.b16 %v18
    %v32 = vunpack.c.l.b16 %v19
    %v33 = vunpack.c.l.b16 %v20
    %v34 = vunpack.c.l.b16 %v21
    %v35 = vpack.c.b16 %v32, %v31
    %v36 = vpack.c.b16 %v34, %v33
    %vm39 = vcmask 261120
    %v41 = vsel %vm39, %v26, 0
    %43 = vmatprep.subr.bf16.mxu0 0
    %44 = vmatpush1.bf16.msra.mxu0 %v35
    %45 = vmatprep.subr.bf16.mxu0 0
    %46 = vmatpush1.bf16.msra.mxu0 %v36
    %47 = vmatprep.subr.bf16.mxu0 0
    %48 = vmatpush1.bf16.msra.mxu0 0
    %49 = vmatprep.subr.bf16.mxu0 0
    %50 = vmatpush1.bf16.msra.mxu0 0
    %51 = vmatprep.subr.bf16.mxu0 0
    %52 = vmatpush1.bf16.msra.mxu0 0
    %53 = vmatprep.subr.bf16.mxu0 0
    %54 = vmatpush1.bf16.msra.mxu0 0
    %55 = vmatprep.subr.bf16.mxu0 0
    %56 = vmatpush1.bf16.msra.mxu0 0
    %57 = vmatprep.subr.bf16.mxu0 0
    %58 = vmatpush1.bf16.msra.mxu0 0
    %59 = vmatprep.subr.bf16.mxu0 0
    %60 = vmatpush1.bf16.msra.mxu0 0
    %61 = vmatprep.subr.bf16.mxu0 0
    %62 = vmatpush1.bf16.msra.mxu0 0
    %63 = vmatprep.subr.bf16.mxu0 0
    %64 = vmatpush1.bf16.msra.mxu0 0
    %65 = vmatprep.subr.bf16.mxu0 0
    %66 = vmatpush1.bf16.msra.mxu0 0
    %67 = vmatprep.subr.bf16.mxu0 0
    %68 = vmatpush1.bf16.msra.mxu0 0
    %69 = vmatprep.subr.bf16.mxu0 0
    %70 = vmatpush1.bf16.msra.mxu0 0
    %71 = vmatprep.subr.bf16.mxu0 0
    %72 = vmatpush1.bf16.msra.mxu0 0
    %73 = vmatprep.subr.bf16.mxu0 0
    %74 = vmatpush1.bf16.msra.mxu0 0
    %75 = vmatprep.mubr.bf16.mxu0 0
    %76 = vmatmul.mubr.bf16.gmra.mrb[0].mxu0 %v41
    %v77 = vpop.f32.mrb[0].mxu0
    %v78 = vadd.f32 0.0, %v77
    %v79 = vpop.f32.mrb[0].mxu0
    %v80 = vpop.f32.mrb[0].mxu0
    %v81 = vadd.f32 0.0, %v80
    %v82 = vpop.f32.mrb[0].mxu0
    %83 = vdwg.mxu0
    %vm84 = vcmask 64512
    %85 = vst.msk [vmem:[%s2] sm:$0xff] %vm84, %v78
    %86 = vst.msk [vmem:[%s2 + $0x8] sm:$0xff] %vm84, %v81
    %v87 = vlaneseq
    %v88 = vand.u32 %v87, 127
    %v89 = vsel %vm84, %v78, -inf
    %90 = vmax.xlane.f32.xlu0 %v89
    %v91 = vpop.xlane.xlu0 %90
    %v92 = vsel %vm84, %v81, -inf
    %93 = vmax.xlane.f32.xlu0 %v92
    %v94 = vpop.xlane.xlu0 %93
    %vm95 = vcmp.eq.f32.partialorder %v78, %v91
    %vm96 = vcmp.eq.f32.partialorder %v81, %v94
    %v97 = vsel %vm95, %v88, 8
    %v98 = vsel %vm96, %v88, 8
    %v99 = vsel %vm84, %v97, 2147483647
    %v100 = vand.u32 %v99, 65535
    %v101 = vshra.s32 %v99, 16
    %v102 = vcvt.s32.f32 %v100
    %v103 = vcvt.s32.f32 %v101
    %104 = vmin.xlane.f32.xlu0 %v103
    %v105 = vpop.xlane.xlu0 %104
    %vm106 = vcmp.eq.f32.partialorder %v103, %v105
    %v107 = vsel %vm106, %v102, inf
    %108 = vmin.xlane.f32.xlu0 %v107
    %v109 = vpop.xlane.xlu0 %108
    %v110 = vcvt.f32.s32 %v109
    %v111 = vcvt.f32.s32 %v105
    %v112 = vshll.u32 %v111, 16
    %v113 = vadd.s32 %v112, %v110
    %v114 = vsel %vm84, %v98, 2147483647
    %v115 = vand.u32 %v114, 65535
    %v116 = vshra.s32 %v114, 16
    %v117 = vcvt.s32.f32 %v115
    %v118 = vcvt.s32.f32 %v116
    %119 = vmin.xlane.f32.xlu0 %v118
    %v120 = vpop.xlane.xlu0 %119
    %vm121 = vcmp.eq.f32.partialorder %v118, %v120
    %v122 = vsel %vm121, %v117, inf
    %123 = vmin.xlane.f32.xlu0 %v122
    %v124 = vpop.xlane.xlu0 %123
    %v125 = vcvt.f32.s32 %v124
    %v126 = vcvt.f32.s32 %v120
    %v127 = vshll.u32 %v126, 16
    %v128 = vadd.s32 %v127, %v125
    %v129 = vand.u32 2147483647, %v78
    %v130 = vand.u32 2147483647, %v81
    %v131 = vmax.f32 %v129, %v91
    %v132 = vmax.f32 %v130, %v94
    %v133 = vmax.f32 %v131, 1e-30
    %v134 = vmax.f32 %v132, 1e-30
    %v135 = vsub.f32 %v91, %v78
    %v136 = vsub.f32 %v94, %v81
    %v137 = vrcp.pop %v133
    %v138 = vmul.f32 %v135, %v137
    %v139 = vrcp.pop %v134
    %v140 = vmul.f32 %v136, %v139
    %vm141 = vcmp.gt.f32.partialorder %v138, 0.02
    %vm142 = vcmp.gt.f32.partialorder %v140, 0.02
    %v143 = vsel %vm141, -inf, %v78
    %v144 = vsel %vm142, -inf, %v81
    %v145 = vsel %vm84, %v143, -inf
    %146 = vmax.xlane.f32.xlu0 %v145
    %v147 = vpop.xlane.xlu0 %146
    %v148 = vsel %vm84, %v144, -inf
    %149 = vmax.xlane.f32.xlu0 %v148
    %v150 = vpop.xlane.xlu0 %149
    %v151 = vsub.f32 %v143, %v147
    %v152 = vsub.f32 %v144, %v150
    %v153 = vmul.f32 %v151, 1.442695
    %v154 = vpow.pop %v153
    %v155 = vmul.f32 %v152, 1.442695
    %v156 = vpow.pop %v155
    %v157 = vsel %vm84, %v154, 0.0
    %158 = vadd.xlane.f32.xlu0 %v157
    %v159 = vpop.xlane.xlu0 %158
    %v160 = vsel %vm84, %v156, 0.0
    %161 = vadd.xlane.f32.xlu0 %v160
    %v162 = vpop.xlane.xlu0 %161
    %v163 = vrcp.pop %v159
    %v164 = vmul.f32 %v154, %v163
    %v165 = vrcp.pop %v162
    %v166 = vmul.f32 %v156, %v165
    %vm167 = vcmp.eq.s32.totalorder %v88, %v113
    %vm168 = vcmp.eq.s32.totalorder %v88, %v128
    %v169 = vsel %vm167, %v164, 0.0
    %v170 = vsel %vm168, %v166, 0.0
    %v171 = vsel %vm84, %v169, 0.0
    %172 = vadd.xlane.f32.xlu0 %v171
    %v173 = vpop.xlane.xlu0 %172
    %v174 = vsel %vm84, %v170, 0.0
    %175 = vadd.xlane.f32.xlu0 %v174
    %v176 = vpop.xlane.xlu0 %175
    %v177 = vsel %vm167, -inf, %v78
    %v178 = vsel %vm168, -inf, %v81
    %v179 = vsel %vm84, %v177, -inf
    %180 = vmax.xlane.f32.xlu0 %v179
    %v181 = vpop.xlane.xlu0 %180
    %v182 = vsel %vm84, %v178, -inf
    %183 = vmax.xlane.f32.xlu0 %v182
    %v184 = vpop.xlane.xlu0 %183
    %vm185 = vcmp.eq.f32.partialorder %v177, %v181
    %vm186 = vcmp.eq.f32.partialorder %v178, %v184
    %v187 = vsel %vm185, %v88, 8
    %v188 = vsel %vm186, %v88, 8
    %v189 = vsel %vm84, %v187, 2147483647
    %v190 = vand.u32 %v189, 65535
    %v191 = vshra.s32 %v189, 16
    %v192 = vcvt.s32.f32 %v190
    %v193 = vcvt.s32.f32 %v191
    %194 = vmin.xlane.f32.xlu0 %v193
    %v195 = vpop.xlane.xlu0 %194
    %vm196 = vcmp.eq.f32.partialorder %v193, %v195
    %v197 = vsel %vm196, %v192, inf
    %198 = vmin.xlane.f32.xlu0 %v197
    %v199 = vpop.xlane.xlu0 %198
    %v200 = vcvt.f32.s32 %v199
    %v201 = vcvt.f32.s32 %v195
    %v202 = vshll.u32 %v201, 16
    %v203 = vadd.s32 %v202, %v200
    %v204 = vsel %vm84, %v188, 2147483647
    %v205 = vand.u32 %v204, 65535
    %v206 = vshra.s32 %v204, 16
    %v207 = vcvt.s32.f32 %v205
    %v208 = vcvt.s32.f32 %v206
    %209 = vmin.xlane.f32.xlu0 %v208
    %v210 = vpop.xlane.xlu0 %209
    %vm211 = vcmp.eq.f32.partialorder %v208, %v210
    %v212 = vsel %vm211, %v207, inf
    %213 = vmin.xlane.f32.xlu0 %v212
    %v214 = vpop.xlane.xlu0 %213
    %v215 = vcvt.f32.s32 %v214
    %v216 = vcvt.f32.s32 %v210
    %v217 = vshll.u32 %v216, 16
    %v218 = vadd.s32 %v217, %v215
    %v219 = vmax.f32 %v129, %v181
    %v220 = vmax.f32 %v130, %v184
    %v221 = vmax.f32 %v219, 1e-30
    %v222 = vmax.f32 %v220, 1e-30
    %v223 = vsub.f32 %v181, %v78
    %v224 = vsub.f32 %v184, %v81
    %v225 = vrcp.pop %v221
    %v226 = vmul.f32 %v223, %v225
    %v227 = vrcp.pop %v222
    %v228 = vmul.f32 %v224, %v227
    %vm229 = vcmp.gt.f32.partialorder %v226, 0.02
    %vm230 = vcmp.gt.f32.partialorder %v228, 0.02
    %v231 = vsel %vm229, -inf, %v177
    %v232 = vsel %vm230, -inf, %v178
    %v233 = vsel %vm84, %v231, -inf
    %234 = vmax.xlane.f32.xlu0 %v233
    %v235 = vpop.xlane.xlu0 %234
    %v236 = vsel %vm84, %v232, -inf
    %237 = vmax.xlane.f32.xlu0 %v236
    %v238 = vpop.xlane.xlu0 %237
    %v239 = vsub.f32 %v231, %v235
    %v240 = vsub.f32 %v232, %v238
    %v241 = vmul.f32 %v239, 1.442695
    %v242 = vpow.pop %v241
    %v243 = vmul.f32 %v240, 1.442695
    %v244 = vpow.pop %v243
    %v245 = vsel %vm84, %v242, 0.0
    %246 = vadd.xlane.f32.xlu0 %v245
    %v247 = vpop.xlane.xlu0 %246
    %v248 = vsel %vm84, %v244, 0.0
    %249 = vadd.xlane.f32.xlu0 %v248
    %v250 = vpop.xlane.xlu0 %249
    %v251 = vrcp.pop %v247
    %v252 = vmul.f32 %v242, %v251
    %v253 = vrcp.pop %v250
    %v254 = vmul.f32 %v244, %v253
    %vm255 = vcmp.eq.s32.totalorder %v88, %v203
    %vm256 = vcmp.eq.s32.totalorder %v88, %v218
    %v257 = vsel %vm255, %v252, 0.0
    %v258 = vsel %vm256, %v254, 0.0
    %v259 = vsel %vm84, %v257, 0.0
    %260 = vadd.xlane.f32.xlu0 %v259
    %v261 = vpop.xlane.xlu0 %260
    %v262 = vsel %vm84, %v258, 0.0
    %263 = vadd.xlane.f32.xlu0 %v262
    %v264 = vpop.xlane.xlu0 %263
    %v265 = vsel %vm167, %v173, 0.0
    %v266 = vsel %vm168, %v176, 0.0
    %v267 = vsel %vm255, %v261, 0.0
    %v268 = vsel %vm256, %v264, 0.0
    %v269 = vadd.f32 %v265, %v267
    %v270 = vadd.f32 %v266, %v268
    %v271 = vlaneseq
    %v272 = vshrl.u32 %v271, 7
    %v273 = vadd.s32 %v272, 8
    %s274 = smul.u32 0, 16
    %v275 = vstv %s274
    %v276 = vadd.s32 %v275, %v272
    %v277 = vadd.s32 %v275, %v273
    %vm278 = vcmp.lt.s32.totalorder %v276, 16
    %vm279 = vcmp.lt.s32.totalorder %v277, 16
    %v280 = vsel %vm278, %v269, 0.0
    %v281 = vsel %vm279, %v270, 0.0
    %282 = vst.msk [vmem:[%s3] sm:$0xff] %vm84, %v280
    %283 = vst.msk [vmem:[%s3 + $0x8] sm:$0xff] %vm84, %v281
    %vm284 = vcmp.gt.f32.partialorder %v280, 0.0
    %vm285 = vcmp.gt.f32.partialorder %v281, 0.0
    %v286 = vsel %vm284, 1.0, 0.0
    %v287 = vsel %vm285, 1.0, 0.0
    %v288 = vsel %vm84, %v286, -inf
    %v289 = vsel %vm84, %v287, -inf
    %v290 = vmax.f32 %v288, %v289
    %v291 = vrot.slane %v290, 4
    %v292 = vmax.f32 %v290, %v291
    %v293 = vrot.slane %v292, 2
    %v294 = vmax.f32 %v292, %v293
    %v295 = vrot.slane %v294, 1
    %v296 = vmax.f32 %v294, %v295
    %v297 = vcvt.f32.s32.to.zero.pseudo %v296
    %vm298 = vcmask 57344
    %299 = vst.msk [vmem:[#allocation2] sm:$0x1] %vm298, %v297
    // Predicated region
    $region10: #{tpu_custom_call.1} parent=1 // pred_check
      _
    $region11: #{tpu_custom_call.1} parent=1 // pred_check_branch
      %301 = sbr.rel (0) target = $region13
    $region12: #{tpu_custom_call.1} parent=1 // pred_region
      _
    $region13: #{tpu_custom_call.1} parent=1 // pred_fallthru
      _
    // Predicated region
    $region14: #{tpu_custom_call.1} parent=1 // pred_check
      _
    $region15: #{tpu_custom_call.1} parent=1 // pred_check_branch
      %303 = sbr.rel (0) target = $region17
    $region16: #{tpu_custom_call.1} parent=1 // pred_region
      _
    $region17: #{tpu_custom_call.1} parent=1 // pred_fallthru
      _
    // Predicated region
    $region18: #{tpu_custom_call.1} parent=1 // pred_check
      _
    $region19: #{tpu_custom_call.1} parent=1 // pred_check_branch
      %305 = sbr.rel (0) target = $region21
    $region20: #{tpu_custom_call.1} parent=1 // pred_region
      %s307 = ssub.s32 16, 16
      %308 = vsyncadd [#allocation3], %s307
      %s310 = sshll.u32 [#allocation2], 4
      %s311 = int_to_ptr.vmem [resolvable:$true] %s310
      %313 = dma.vmem_to_hbm [thread:$0]  %s311, 16, %s4, [#allocation3]
    $region21: #{tpu_custom_call.1} parent=1 // pred_fallthru
      _
    // Predicated region
    $region22: #{tpu_custom_call.1} parent=1 // pred_check
      _
    $region23: #{tpu_custom_call.1} parent=1 // pred_check_branch
      %315 = sbr.rel (0) target = $region25
    $region24: #{tpu_custom_call.1} parent=1 // pred_region
      _
    $region25: #{tpu_custom_call.1} parent=1 // pred_fallthru
      _
    // Predicated region
    $region26: #{tpu_custom_call.1} parent=1 // pred_check
      _
    $region27: #{tpu_custom_call.1} parent=1 // pred_check_branch
      %317 = sbr.rel (0) target = $region29
    $region28: #{tpu_custom_call.1} parent=1 // pred_region
      _
    $region29: #{tpu_custom_call.1} parent=1 // pred_fallthru
      _
    // Predicated region
    $region30: #{tpu_custom_call.1} parent=1 // pred_check
      _
    $region31: #{tpu_custom_call.1} parent=1 // pred_check_branch
      %319 = sbr.rel (0) target = $region33
    $region32: #{tpu_custom_call.1} parent=1 // pred_region
      %320 = dma.done [#allocation3], 16
    $region33: #{tpu_custom_call.1} parent=1 // pred_fallthru
      _
    %321 = vsyncpa [#allocation3], 1

</llo_original>
